<compile_context>
chip_gen: v7x
topology: tpu7x:2x2x1
jax: 0.10.0
libtpu: 0.0.40
codegen_flags: <defaults>
</compile_context>

<pallas_src>
import functools

import jax
import jax.numpy as jnp
from jax.experimental import pallas as pl
from jax.experimental.pallas import tpu as pltpu

_N_PAD = 32                 # padded fused output width per logical row (27 -> 32 lanes)
_PACK = 4                   # batch rows packed per MXU row (4 * 32 = 128 lanes)
_IN = 12                    # input features
_K_PACKED = _PACK * _IN     # 48
_N_PACKED = _PACK * _N_PAD  # 128 (full lane width)

_MAX_TILE_ROWS4 = 2048      # packed rows per grid step  (= 8192 batch rows)
_SPLIT_ROWS4 = 1024         # above this (4096 batch rows), force >= 2 grid steps (v7x)


def _round_up(n: int, m: int) -> int:
    return ((n + m - 1) // m) * m


def _fused_mlp_kernel(x_ref, w_ref, b_ref, o_ref):
    """One tile: y = x_packed @ W_blockdiag + b_tiled (single MXU push, dense store)."""
    o_ref[...] = (
        jnp.dot(x_ref[...], w_ref[...], preferred_element_type=jnp.float32)
        + b_ref[...]
    )


def _compose_params(params):
    """Fold the 3 affine layers into one [12, 32] weight and [1, 32] bias, then
    build the 4x row-packed block-diagonal (48, 128) weight / (1, 128) bias."""
    w1, b1 = params["w1"], params["b1"]          # [12,8], [1,8]
    w2, b2 = params["w2"], params["b2"]          # [8,9],  [1,9]
    w3, b3 = params["w3"], params["b3"]          # [9,10], [1,10]

    w2c = w1 @ w2                                # [12,9]
    w3c = w2c @ w3                               # [12,10]
    b2c = b1 @ w2 + b2                           # [1,9]
    b3c = b2c @ w3 + b3                          # [1,10]

    w_cat = jnp.concatenate([w1, w2c, w3c], axis=1)   # [12,27]
    b_cat = jnp.concatenate([b1, b2c, b3c], axis=1)   # [1,27]

    pad = _N_PAD - w_cat.shape[1]
    w_fused = jnp.pad(w_cat, ((0, 0), (0, pad))).astype(jnp.float32)   # [12,32]
    b_fused = jnp.pad(b_cat, ((0, 0), (0, pad))).astype(jnp.float32)   # [1,32]

    # Block-diagonal weight: row-group r of the packed input hits column-group r.
    w_pk = jnp.zeros((_K_PACKED, _N_PACKED), jnp.float32)
    for r in range(_PACK):
        w_pk = w_pk.at[r * _IN:(r + 1) * _IN, r * _N_PAD:(r + 1) * _N_PAD].set(w_fused)
    b_pk = jnp.tile(b_fused, (1, _PACK))                                # [1,128]
    return w_pk, b_pk


def _choose_tile(rows4: int) -> int:
    """Packed-row tile size (multiple of 8)."""
    if rows4 > _MAX_TILE_ROWS4:
        return _MAX_TILE_ROWS4
    if rows4 >= _SPLIT_ROWS4:
        # Big single-tile batch: split into 2 steps so v7x's 2nd TensorCore is used.
        return _round_up((rows4 + 1) // 2, 8)
    return _round_up(max(rows4, 8), 8)


@functools.partial(jax.jit, static_argnames=())
def test_model_forward(x, params):
    """Runs the TestModel forward pass as a single batch-tiled Pallas TPU kernel.

    Args:
        x: [batch, 12] float32 input ("images").
        params: dict with w1[12,8], b1[1,8], w2[8,9], b2[1,9], w3[9,10], b3[1,10]
                (weights stored as [in, out], i.e. PyTorch weight transposed).

    Returns:
        (out1 [batch, 8], out2 [batch, 9], out3 [batch, 10])
    """
    batch, in_feat = x.shape
    assert in_feat == _IN

    w_pk, b_pk = _compose_params(params)

    # --- pack 4 batch rows per MXU row --------------------------------------
    rows4 = -(-batch // _PACK)                    # packed rows needed
    b4_tile = _choose_tile(rows4)
    padded_rows4 = _round_up(rows4, b4_tile)
    padded_batch = padded_rows4 * _PACK

    if padded_batch != batch:
        x = jnp.pad(x, ((0, padded_batch - batch), (0, 0)))
    x_pk = x.reshape(padded_rows4, _K_PACKED)     # zero-copy row packing

    grid = (padded_rows4 // b4_tile,)

    cost = pl.CostEstimate(
        flops=2 * padded_rows4 * _K_PACKED * _N_PACKED,
        transcendentals=0,
        bytes_accessed=4 * (padded_rows4 * (_K_PACKED + _N_PACKED)
                            + _K_PACKED * _N_PACKED + _N_PACKED),
    )

    y_pk = pl.pallas_call(
        _fused_mlp_kernel,
        out_shape=jax.ShapeDtypeStruct((padded_rows4, _N_PACKED), jnp.float32),
        grid=grid,
        in_specs=[
            pl.BlockSpec((b4_tile, _K_PACKED), lambda i: (i, 0)),     # packed x tile
            pl.BlockSpec((_K_PACKED, _N_PACKED), lambda i: (0, 0)),   # block-diag W
            pl.BlockSpec((1, _N_PACKED), lambda i: (0, 0)),           # tiled bias
        ],
        out_specs=pl.BlockSpec((b4_tile, _N_PACKED), lambda i: (i, 0)),
        compiler_params=pltpu.CompilerParams(
            dimension_semantics=("parallel",),
            vmem_limit_bytes=32 * 1024 * 1024,
        ),
        cost_estimate=cost,
    )(x_pk, w_pk, b_pk)

    # [padded_rows4, 128] -> [padded_batch, 32] is a zero-copy reshape in HBM.
    y = y_pk.reshape(padded_batch, _N_PAD)

    # The module's forward returns three standalone tensors; cheap column slices
    # (plus a row slice only when batch wasn't a multiple of 32) remain.
    out1 = y[:batch, 0:8]
    out2 = y[:batch, 8:17]
    out3 = y[:batch, 17:27]
    return out1, out2, out3


def init_params(key):
    """Deterministic init mimicking nn.Linear shapes (weights stored transposed)."""
    ks = jax.random.split(key, 6)

    def uniform(k, shape, fan_in):
        bound = 1.0 / jnp.sqrt(fan_in)
        return jax.random.uniform(k, shape, jnp.float32, -bound, bound)

    return {
        # nn.Linear(12, 8): weight [8,12] -> stored as [12,8]
        "w1": uniform(ks[0], (12, 8), 12.0),
        "b1": uniform(ks[1], (1, 8), 12.0),
        # nn.Linear(8, 9): weight [9,8] -> stored as [8,9]
        "w2": uniform(ks[2], (8, 9), 8.0),
        "b2": uniform(ks[3], (1, 9), 8.0),
        # nn.Linear(9, 10): weight [10,9] -> stored as [9,10]
        "w3": uniform(ks[4], (9, 10), 9.0),
        "b3": uniform(ks[5], (1, 10), 9.0),
    }


if __name__ == "__main__":
    key = jax.random.PRNGKey(0)
    k_param, k_x = jax.random.split(key)

    params = init_params(k_param)
    batch = 8
    x = jax.random.normal(k_x, (batch, 12), dtype=jnp.float32)

    out1, out2, out3 = test_model_forward(x, params)
    jax.block_until_ready((out1, out2, out3))

    # Reference check in plain JAX (same math as the PyTorch forward, un-fused chain).
    ref1 = x @ params["w1"] + params["b1"]
    ref2 = ref1 @ params["w2"] + params["b2"]
    ref3 = ref2 @ params["w3"] + params["b3"]
    assert out1.shape == (batch, 8) and out2.shape == (batch, 9) and out3.shape == (batch, 10)
    # Layer fusion reassociates f32 sums slightly; tolerance per review.
    assert jnp.allclose(out1, ref1, atol=1e-4, rtol=1e-4)
    assert jnp.allclose(out2, ref2, atol=1e-4, rtol=1e-4)
    assert jnp.allclose(out3, ref3, atol=1e-4, rtol=1e-4)

    # Also exercise a larger batch that takes the multi-step / split path.
    k_big = jax.random.PRNGKey(1)
    xb = jax.random.normal(k_big, (5000, 12), dtype=jnp.float32)
    b1o, b2o, b3o = test_model_forward(xb, params)
    jax.block_until_ready((b1o, b2o, b3o))
    rb1 = xb @ params["w1"] + params["b1"]
    rb2 = rb1 @ params["w2"] + params["b2"]
    rb3 = rb2 @ params["w3"] + params["b3"]
    assert jnp.allclose(b1o, rb1, atol=1e-4, rtol=1e-4)
    assert jnp.allclose(b2o, rb2, atol=1e-4, rtol=1e-4)
    assert jnp.allclose(b3o, rb3, atol=1e-4, rtol=1e-4)

    print("KERNEL_OK")
</pallas_src>

<mosaic_0001>
module attributes {stable_mosaic.version = 11 : i64} {
  func.func @_fused_mlp_kernel(%arg0: i32, %arg1: memref<8x48xf32, #tpu.memory_space<vmem>>, %arg2: memref<48x128xf32, #tpu.memory_space<vmem>>, %arg3: memref<1x128xf32, #tpu.memory_space<vmem>>, %arg4: memref<8x128xf32, #tpu.memory_space<vmem>>) attributes {dimension_semantics = [#tpu.dimension_semantics<parallel>], iteration_bounds = array<i64: 1>, scalar_prefetch = 0 : i64, scratch_operands = 0 : i64, tpu.core_type = #tpu.core_type<tc>, window_params = [{transform_indices = @transform_0, window_bounds = array<i64: 8, 48>}, {pipeline_mode = #tpu.pipeline_mode<synchronous>, transform_indices = @transform_1, window_bounds = array<i64: 48, 128>}, {pipeline_mode = #tpu.pipeline_mode<synchronous>, transform_indices = @transform_2, window_bounds = array<i64: 1, 128>}, {transform_indices = @transform_3, window_bounds = array<i64: 8, 128>}]} {
    %c0 = arith.constant 0 : index
    %c0_0 = arith.constant 0 : index
    %0 = vector.load %arg1[%c0, %c0_0] : memref<8x48xf32, #tpu.memory_space<vmem>>, vector<8x48xf32>
    %c0_1 = arith.constant 0 : index
    %c0_2 = arith.constant 0 : index
    %1 = vector.load %arg2[%c0_1, %c0_2] : memref<48x128xf32, #tpu.memory_space<vmem>>, vector<48x128xf32>
    %cst = arith.constant dense<0.000000e+00> : vector<8x128xf32>
    %2 = tpu.matmul %0, %1, %cst {dimension_numbers = #tpu.dot_dimension_numbers<[1], [0], [0], [1], [0, 0, 1, 1], [], []>} : vector<8x48xf32>, vector<48x128xf32>, vector<8x128xf32> -> vector<8x128xf32>
    %c0_3 = arith.constant 0 : index
    %c0_4 = arith.constant 0 : index
    %3 = vector.load %arg3[%c0_3, %c0_4] : memref<1x128xf32, #tpu.memory_space<vmem>>, vector<1x128xf32>
    %4 = vector.broadcast %3 : vector<1x128xf32> to vector<8x128xf32>
    %5 = arith.addf %2, %4 : vector<8x128xf32>
    %c0_5 = arith.constant 0 : index
    %c0_6 = arith.constant 0 : index
    %6 = vector.load %arg4[%c0_5, %c0_6] : memref<8x128xf32, #tpu.memory_space<vmem>>, vector<8x128xf32>
    tpu.vector_store %arg4[%c0_5, %c0_6], %5 {strides = array<i32>} : memref<8x128xf32, #tpu.memory_space<vmem>>, vector<8x128xf32>,
    return
  }
  func.func @transform_0(%arg0: i32) -> (i32, i32) {
    %c0_i32 = arith.constant 0 : i32
    %c0_i32_0 = arith.constant 0 : i32
    return %arg0, %c0_i32 : i32, i32
  }
  func.func @transform_1(%arg0: i32) -> (i32, i32) {
    %c0_i32 = arith.constant 0 : i32
    %c0_i32_0 = arith.constant 0 : i32
    %c0_i32_1 = arith.constant 0 : i32
    return %c0_i32, %c0_i32_0 : i32, i32
  }
  func.func @transform_2(%arg0: i32) -> (i32, i32) {
    %c0_i32 = arith.constant 0 : i32
    %c0_i32_0 = arith.constant 0 : i32
    %c0_i32_1 = arith.constant 0 : i32
    return %c0_i32, %c0_i32_0 : i32, i32
  }
  func.func @transform_3(%arg0: i32) -> (i32, i32) {
    %c0_i32 = arith.constant 0 : i32
    %c0_i32_0 = arith.constant 0 : i32
    return %arg0, %c0_i32 : i32, i32
  }
}

</mosaic_0001>

<llo_original>
// kernel: test_model_forward.1
$region0: #{test_model_forward.1}
  #allocation0 [shape = 'u32[]', space=smem, size = 0x4, offset = 0x4, fixed_abs, tag = 'smem constant byte address 0x4 - core index']
  #allocation1 [shape = 'u32[144,128]{1,0:T(1,128)}', space=vmem, size = 0x12000, scoped, tag = 'internal scratch']
  %s0 = inlined_call_operand.vmem [shape: f32[8,48], index: 0, kind: input, shape index: {}]
  %s1 = inlined_call_operand.vmem [shape: f32[48,128], index: 1, kind: input, shape index: {}]
  %s2 = inlined_call_operand.vmem [shape: f32[1,128], index: 2, kind: input, shape index: {}]
  %s3 = inlined_call_operand.vmem [shape: f32[8,128], index: 3, kind: output, shape index: {}]
  %s4 = sld [smem:[#allocation0]]
  $region22: #{test_model_forward.1} parent=0
    _
  %s6 = ssub.s32 1, %s4
  %s7 = scalar_select 0, %s6, %s4
  // Predicated region
  $region2: #{test_model_forward.1} parent=0 // pred_check
    _
  $region3: #{test_model_forward.1} parent=0 // pred_check_branch
    %9 = sbr.rel (0) target = $region5
  $region4: #{test_model_forward.1} parent=0 // pred_region
    _
  $region5: #{test_model_forward.1} parent=0 // pred_fallthru
    _
  // Predicated region
  $region6: #{test_model_forward.1} parent=0 // pred_check
    _
  $region7: #{test_model_forward.1} parent=0 // pred_check_branch
    %11 = sbr.rel (0) target = $region9
  $region8: #{test_model_forward.1} parent=0 // pred_region
    _
  $region9: #{test_model_forward.1} parent=0 // pred_fallthru
    _
  // Predicated region
  $region10: #{test_model_forward.1} parent=0 // pred_check
    _
  $region11: #{test_model_forward.1} parent=0 // pred_check_branch
    %13 = sbr.rel (0) target = $region13
  $region12: #{test_model_forward.1} parent=0 // pred_region
    _
  $region13: #{test_model_forward.1} parent=0 // pred_fallthru
    _
  %v14 = vld [vmem:[%s0] sm:$0xff]
  %v15 = vld [vmem:[%s1] sm:$0xff]
  %v16 = vld [vmem:[%s1 + $0x8] sm:$0xff]
  %v17 = vld [vmem:[%s1 + $0x10] sm:$0xff]
  %v18 = vld [vmem:[%s1 + $0x18] sm:$0xff]
  %v19 = vld [vmem:[%s1 + $0x20] sm:$0xff]
  %v20 = vld [vmem:[%s1 + $0x28] sm:$0xff]
  %v21 = vld [vmem:[%s2] sm:$0x1]
  %v23 = vlaneseq
  %v24 = vshrl.u32 %v23, 7
  %v25 = vsub.s32 0, %v24
  %v26 = vrot.slane %v21, %v25
  %vm28 = vcmask 392192
  %v30 = vsel %vm28, %v14, 0
  %32 = vmatprep.subr.mxu0 0.0
  %33 = vmatpush1.msra.mxu0 %v15
  %34 = vmatprep.subr.mxu0 0.0
  %35 = vmatpush1.msra.mxu0 %v16
  %36 = vmatprep.subr.mxu0 0.0
  %37 = vmatpush1.msra.mxu0 %v17
  %38 = vmatprep.subr.mxu0 0.0
  %39 = vmatpush1.msra.mxu0 %v18
  %40 = vmatprep.subr.mxu0 0.0
  %41 = vmatpush1.msra.mxu0 %v19
  %42 = vmatprep.subr.mxu0 0.0
  %43 = vmatpush1.msra.mxu0 %v20
  %44 = vmatprep.subr.mxu0 0.0
  %45 = vmatpush1.msra.mxu0 0.0
  %46 = vmatprep.subr.mxu0 0.0
  %47 = vmatpush1.msra.mxu0 0.0
  %48 = vmatprep.subr.mxu0 0.0
  %49 = vmatpush1.msra.mxu0 0.0
  %50 = vmatprep.subr.mxu0 0.0
  %51 = vmatpush1.msra.mxu0 0.0
  %52 = vmatprep.subr.mxu0 0.0
  %53 = vmatpush1.msra.mxu0 0.0
  %54 = vmatprep.subr.mxu0 0.0
  %55 = vmatpush1.msra.mxu0 0.0
  %56 = vmatprep.subr.mxu0 0.0
  %57 = vmatpush1.msra.mxu0 0.0
  %58 = vmatprep.subr.mxu0 0.0
  %59 = vmatpush1.msra.mxu0 0.0
  %60 = vmatprep.subr.mxu0 0.0
  %61 = vmatpush1.msra.mxu0 0.0
  %62 = vmatprep.subr.mxu0 0.0
  %63 = vmatpush1.msra.mxu0 0.0
  %64 = vmatprep.subr.mxu0 0.0
  %65 = vmatpush1.msra.mxu0 0.0
  %66 = vmatprep.subr.mxu0 0.0
  %67 = vmatpush1.msra.mxu0 0.0
  %68 = vmatprep.subr.mxu0 0.0
  %69 = vmatpush1.msra.mxu0 0.0
  %70 = vmatprep.subr.mxu0 0.0
  %71 = vmatpush1.msra.mxu0 0.0
  %72 = vmatprep.subr.mxu0 0.0
  %73 = vmatpush1.msra.mxu0 0.0
  %74 = vmatprep.subr.mxu0 0.0
  %75 = vmatpush1.msra.mxu0 0.0
  %76 = vmatprep.subr.mxu0 0.0
  %77 = vmatpush1.msra.mxu0 0.0
  %78 = vmatprep.subr.mxu0 0.0
  %79 = vmatpush1.msra.mxu0 0.0
  %80 = vmatprep.subr.mxu0 0.0
  %81 = vmatpush1.msra.mxu0 0.0
  %82 = vmatprep.subr.mxu0 0.0
  %83 = vmatpush1.msra.mxu0 0.0
  %84 = vmatprep.subr.mxu0 0.0
  %85 = vmatpush1.msra.mxu0 0.0
  %86 = vmatprep.subr.mxu0 0.0
  %87 = vmatpush1.msra.mxu0 0.0
  %88 = vmatprep.subr.mxu0 0.0
  %89 = vmatpush1.msra.mxu0 0.0
  %90 = vmatprep.subr.mxu0 0.0
  %91 = vmatpush1.msra.mxu0 0.0
  %92 = vmatprep.subr.mxu0 0.0
  %93 = vmatpush1.msra.mxu0 0.0
  %94 = vmatprep.subr.mxu0 0.0
  %95 = vmatpush1.msra.mxu0 0.0
  %96 = vmatprep.mubr.f32.mxu0 0.0
  %97 = vmatmul.mubr.f32.gmra.mrb[0].mxu0 %v30
  %v98 = vpop.f32.mrb[0].mxu0
  %v99 = vadd.f32 %v26, %v98
  %v100 = vpop.f32.mrb[0].mxu0
  %101 = vdwg.mxu0
  %102 = vst [vmem:[%s3] sm:$0xff] %v99
  // Predicated region
  $region14: #{test_model_forward.1} parent=0 // pred_check
    _
  $region15: #{test_model_forward.1} parent=0 // pred_check_branch
    %104 = sbr.rel (0) target = $region17
  $region16: #{test_model_forward.1} parent=0 // pred_region
    _
  $region17: #{test_model_forward.1} parent=0 // pred_fallthru
    _
  // Predicated region
  $region18: #{test_model_forward.1} parent=0 // pred_check
    _
  $region19: #{test_model_forward.1} parent=0 // pred_check_branch
    %106 = sbr.rel (0) target = $region21
  $region20: #{test_model_forward.1} parent=0 // pred_region
    _
  $region21: #{test_model_forward.1} parent=0 // pred_fallthru
    _

</llo_original>
